<compile_context>
chip_gen: v5e
topology: v5e:2x2
jax: 0.10.0
libtpu: 0.0.40
codegen_flags: <defaults>
</compile_context>

<pallas_src>
import functools

import jax
import jax.numpy as jnp
from jax.experimental import pallas as pl
from jax.experimental.pallas import tpu as pltpu


def _round_up(x, m):
    return ((x + m - 1) // m) * m


def _prep_kernel(feat_ref, w_ref, onorm_ref, proj_ref, fsrc_ref, eler_ref, *, num_heads):
    # feat_ref: (T, Cin)  w_ref: (Cin, H*F)  onorm_ref: (T, 1)  proj_ref: (H*F, 2H)
    # outputs: fsrc (T, H*F), eler (T, 2H) = [el | er]
    x = feat_ref[...]
    # fc fused across all heads: single MXU matmul with H*F output columns
    feat_lin = jnp.dot(x, w_ref[...], preferred_element_type=jnp.float32)       # (T, H*F)
    onorm = onorm_ref[...]                                                       # (T, 1)
    fsrc_ref[...] = feat_lin * onorm                                             # out-degree norm
    # both attention projections in ONE matmul; el uses the normalized feat_src, which is
    # a per-row scale, so scale the first H columns by onorm afterwards.
    eler = jnp.dot(feat_lin, proj_ref[...], preferred_element_type=jnp.float32)  # (T, 2H)
    lane = jax.lax.broadcasted_iota(jnp.int32, eler.shape, 1)
    eler_ref[...] = jnp.where(lane < num_heads, eler * onorm, eler)


def _aggregate_kernel(adj_ref, er_ref, el_ref, fsrc_bd_ref, bias_ref, out_ref, *, num_heads):
    # adj_ref: (T, Np) f32 streamed per dst tile   er_ref: (T, H)   el_ref: (H, Np)
    # fsrc_bd_ref: (H*Np, H*F) block-diagonal      bias_ref: (1, H*F)   out_ref: (T, H*F)
    A = adj_ref[...]
    er = er_ref[...]
    el = el_ref[...]

    # dst-side (in-degree) normalization from the adjacency tile already in VMEM
    in_deg = jnp.sum(A, axis=1, keepdims=True)                        # (T, 1)
    in_norm = jax.lax.rsqrt(jnp.maximum(in_deg, 1.0))

    # per-head masked attention weights placed side-by-side along lanes; Np is a multiple
    # of 128 so each piece is whole-vreg aligned (no masked lane relayouts).
    pieces = []
    for h in range(num_heads):                                        # static, unrolled
        e_h = jnp.tanh(er[:, h:h + 1] + el[h:h + 1, :])               # (T, Np)
        pieces.append(A * e_h)
    lhs = jnp.concatenate(pieces, axis=-1)                            # (T, H*Np)

    # ONE wide MXU matmul against the block-diagonal feat_src -> lane-dense (T, H*F)
    rst = jnp.dot(lhs, fsrc_bd_ref[...], preferred_element_type=jnp.float32)
    out_ref[...] = rst * in_norm + bias_ref[...]


def pre_gat_conv_hereo(feat, adj, w_fc, attn_l, attn_r, bias):
    """feat: (N, Cin), adj: (N, N) [dst, src] in {0,1}, w_fc: (H, F, Cin),
    attn_l/attn_r/bias: (H, 1, F).  Returns (N, H, F) float32."""
    N, Cin = feat.shape
    H, F, _ = w_fc.shape
    HF = H * F

    # lane-aligned node count (multiple of 128) so the per-head lane concat and the
    # block-diagonal matmul stay vreg-aligned
    Np = _round_up(N, 128)
    pad = Np - N

    try:
        kind = jax.devices()[0].device_kind.lower()
    except Exception:
        kind = ""
    big_mxu = ("v6" in kind) or ("v7" in kind)       # 256x256 MXU generations
    tile = 128
    if big_mxu and Np > 256 and Np % 256 == 0:
        tile = 256                                   # fill the 256-row MXU on v6e/v7x
    tile = min(tile, Np)
    if ("v7" in kind) and (Np // tile < 2) and Np >= 16:
        tile = Np // 2                               # >=2 dst tiles so both v7x TCs get work
    grid = (Np // tile,)

    # head-invariant out-degree norm: a single column-sum pass over the UNPADDED adjacency
    # (no bf16 astype round trip; adjacency is streamed as f32 into the aggregate kernel).
    out_norm = jax.lax.rsqrt(jnp.maximum(jnp.sum(adj, axis=0), 1.0))             # (N,)
    out_norm = (jnp.pad(out_norm, (0, pad)) if pad else out_norm)[:, None]        # (Np, 1)

    feat_p = jnp.pad(feat, ((0, pad), (0, 0))) if pad else feat
    # TODO(synk): when N % 128 != 0 this pad is one extra O(N^2) read+write; in a real
    # pipeline the adjacency would be materialized pre-padded outside the timed path.
    adj_p = jnp.pad(adj, ((0, pad), (0, pad))) if pad else adj

    # fused fc weight (Cin, H*F), head-major columns, matching the output slab layout
    w_all = jnp.transpose(w_fc, (2, 0, 1)).reshape(Cin, HF)
    # combined block-diagonal attention projection (H*F, 2H) = [attn_l | attn_r]
    eyeH = jnp.eye(H, dtype=jnp.float32)
    al_proj = (attn_l.reshape(H, F, 1) * eyeH[:, None, :]).reshape(HF, H)
    ar_proj = (attn_r.reshape(H, F, 1) * eyeH[:, None, :]).reshape(HF, H)
    proj = jnp.concatenate([al_proj, ar_proj], axis=1)                            # (HF, 2H)
    bias_row = bias.reshape(1, HF)

    # ---- prep kernel: per-node work, all heads fused ----
    feat_src, eler = pl.pallas_call(
        functools.partial(_prep_kernel, num_heads=H),
        out_shape=(jax.ShapeDtypeStruct((Np, HF), jnp.float32),
                   jax.ShapeDtypeStruct((Np, 2 * H), jnp.float32)),
        grid_spec=pltpu.PrefetchScalarGridSpec(
            num_scalar_prefetch=0,
            grid=grid,
            in_specs=[
                pl.BlockSpec((tile, Cin), lambda t: (t, 0)),      # feat rows
                pl.BlockSpec((Cin, HF), lambda t: (0, 0)),        # fused fc weight
                pl.BlockSpec((tile, 1), lambda t: (t, 0)),        # out-degree norm
                pl.BlockSpec((HF, 2 * H), lambda t: (0, 0)),      # [attn_l | attn_r] projection
            ],
            out_specs=[
                pl.BlockSpec((tile, HF), lambda t: (t, 0)),       # feat_src slab (lane-dense)
                pl.BlockSpec((tile, 2 * H), lambda t: (t, 0)),    # [el | er]
            ]),
        compiler_params=pltpu.CompilerParams(
            dimension_semantics=("parallel",)),
    )(feat_p, w_all, out_norm, proj)

    # tiny O(N*H) rearrangements, hoisted out of the per-tile aggregate work
    el_t = eler[:, :H].T                                   # (H, Np) lane-major el
    er = eler[:, H:]                                       # (Np, H)
    # block-diagonal feat_src (H*Np, H*F): row h*Np+u, col h*F+f = feat_src[u, h, f].
    # Enables ONE wide matmul per dst tile (no per-head 8-column dots, no 8-lane concat).
    fsrc_bd = jnp.einsum('hnf,hk->hnkf',
                         feat_src.reshape(Np, H, F).transpose(1, 0, 2),
                         eyeH).reshape(H * Np, HF)

    # size the VMEM request from the actual footprint + headroom (never the full 64 MiB
    # of a v7x TensorCore)
    fp = 4 * (2 * tile * Np            # adj block (double-buffered)
              + 2 * tile * H           # er block
              + 2 * H * Np             # el (resident)
              + 2 * H * Np * HF        # block-diag feat_src (resident)
              + 2 * 8 * 128            # bias (rounded to a tile)
              + 2 * tile * HF          # out block
              + 2 * tile * H * Np)     # in-kernel masked-weight pieces + concat temporaries
    vmem_limit = min(int(1.5 * fp) + (8 << 20), 96 << 20)

    cost = pl.CostEstimate(
        flops=2 * Np * Np * H * F + 4 * Np * Np * H,
        transcendentals=Np * Np * H,
        bytes_accessed=4 * (Np * Np + H * Np * HF + Np * HF + 2 * Np * H))

    # ---- aggregate kernel: per-edge work, tiled over dst nodes ----
    out = pl.pallas_call(
        functools.partial(_aggregate_kernel, num_heads=H),
        out_shape=jax.ShapeDtypeStruct((Np, HF), jnp.float32),
        grid_spec=pltpu.PrefetchScalarGridSpec(
            num_scalar_prefetch=0,
            grid=grid,
            in_specs=[
                pl.BlockSpec((tile, Np), lambda t: (t, 0)),       # adjacency dst-tile stream (f32)
                pl.BlockSpec((tile, H), lambda t: (t, 0)),        # er for this dst tile
                pl.BlockSpec((H, Np), lambda t: (0, 0)),          # el, lane-major, all src
                pl.BlockSpec((H * Np, HF), lambda t: (0, 0)),     # block-diag feat_src, all src
                pl.BlockSpec((1, HF), lambda t: (0, 0)),          # bias
            ],
            out_specs=pl.BlockSpec((tile, HF), lambda t: (t, 0)),  # lane-dense slab
        ),
        compiler_params=pltpu.CompilerParams(
            dimension_semantics=("parallel",),
            vmem_limit_bytes=vmem_limit),
        cost_estimate=cost,
    )(adj_p, er, el_t, fsrc_bd, bias_row)

    return out[:N].reshape(N, H, F)


def ref_forward(feat, adj, w_fc, attn_l, attn_r, bias):
    """Pure-JAX reference of the PyTorch forward (dense-graph form)."""
    H, F, Cin = w_fc.shape
    feat_lin = jnp.einsum('nc,hfc->nhf', feat, w_fc)                 # (N, H, F)
    out_deg = jnp.maximum(adj.sum(axis=0), 1.0)                      # per src
    feat_src = feat_lin * (out_deg ** -0.5)[:, None, None]
    el = jnp.sum(feat_src * attn_l.reshape(1, H, F), axis=-1)        # (N, H)
    er = jnp.sum(feat_lin * attn_r.reshape(1, H, F), axis=-1)        # (N, H)
    e = jnp.tanh(el[None, :, :] + er[:, None, :])                    # (Ndst, Nsrc, H)
    w = adj[:, :, None] * e
    rst = jnp.einsum('vuh,uhf->vhf', w, feat_src)
    in_deg = jnp.maximum(adj.sum(axis=1), 1.0)                       # per dst
    rst = rst * (in_deg ** -0.5)[:, None, None]
    return rst + bias.reshape(1, H, F)


if __name__ == "__main__":
    # small shapes consistent with the module; N=200 exercises 2 dst tiles + padding
    N = 200
    in_feats = 32
    out_feats = 8
    num_heads = 4

    key = jax.random.PRNGKey(0)
    k_feat, k_adj, k_w, k_al, k_ar = jax.random.split(key, 5)

    feat = jax.random.normal(k_feat, (N, in_feats), dtype=jnp.float32)

    # deterministic random directed graph, adj[dst, src]
    adj = (jax.random.uniform(k_adj, (N, N)) < 0.3).astype(jnp.float32)

    # xavier_normal-style deterministic init (gain for relu = sqrt(2))
    gain = jnp.sqrt(2.0)
    fan_fc = in_feats + num_heads * out_feats
    w_fc = (gain * jnp.sqrt(2.0 / fan_fc)
            * jax.random.normal(k_w, (num_heads, out_feats, in_feats), dtype=jnp.float32))
    fan_attn = 1 * num_heads + out_feats
    attn_l = (gain * jnp.sqrt(2.0 / fan_attn)
              * jax.random.normal(k_al, (num_heads, 1, out_feats), dtype=jnp.float32))
    attn_r = (gain * jnp.sqrt(2.0 / fan_attn)
              * jax.random.normal(k_ar, (num_heads, 1, out_feats), dtype=jnp.float32))
    bias = jnp.zeros((num_heads, 1, out_feats), dtype=jnp.float32)   # nn.init.constant_(bias, 0)

    out = pre_gat_conv_hereo(feat, adj, w_fc, attn_l, attn_r, bias)
    out = jax.block_until_ready(out)

    ref = ref_forward(feat, adj, w_fc, attn_l, attn_r, bias)
    assert out.shape == (N, num_heads, out_feats)
    max_err = jnp.max(jnp.abs(out - ref))
    assert jnp.allclose(out, ref, atol=1e-3, rtol=1e-3), f"mismatch vs reference (max abs err {max_err})"

    print("KERNEL_OK")
</pallas_src>

<mosaic_0001>
module attributes {stable_mosaic.version = 11 : i64} {
  func.func @_prep_kernel(%arg0: i32, %arg1: memref<128x32xf32, #tpu.memory_space<vmem>>, %arg2: memref<32x32xf32, #tpu.memory_space<vmem>>, %arg3: memref<128x1xf32, #tpu.memory_space<vmem>>, %arg4: memref<32x8xf32, #tpu.memory_space<vmem>>, %arg5: memref<128x32xf32, #tpu.memory_space<vmem>>, %arg6: memref<128x8xf32, #tpu.memory_space<vmem>>) attributes {dimension_semantics = [#tpu.dimension_semantics<parallel>], iteration_bounds = array<i64: 2>, scalar_prefetch = 0 : i64, scratch_operands = 0 : i64, tpu.core_type = #tpu.core_type<tc>, window_params = [{transform_indices = @transform_0, window_bounds = array<i64: 128, 32>}, {pipeline_mode = #tpu.pipeline_mode<synchronous>, transform_indices = @transform_1, window_bounds = array<i64: 32, 32>}, {transform_indices = @transform_2, window_bounds = array<i64: 128, 1>}, {pipeline_mode = #tpu.pipeline_mode<synchronous>, transform_indices = @transform_3, window_bounds = array<i64: 32, 8>}, {transform_indices = @transform_4, window_bounds = array<i64: 128, 32>}, {transform_indices = @transform_5, window_bounds = array<i64: 128, 8>}]} {
    %c0 = arith.constant 0 : index
    %c0_0 = arith.constant 0 : index
    %0 = vector.load %arg1[%c0, %c0_0] : memref<128x32xf32, #tpu.memory_space<vmem>>, vector<128x32xf32>
    %c0_1 = arith.constant 0 : index
    %c0_2 = arith.constant 0 : index
    %1 = vector.load %arg2[%c0_1, %c0_2] : memref<32x32xf32, #tpu.memory_space<vmem>>, vector<32x32xf32>
    %cst = arith.constant dense<0.000000e+00> : vector<128x32xf32>
    %2 = tpu.matmul %0, %1, %cst {dimension_numbers = #tpu.dot_dimension_numbers<[1], [0], [0], [1], [0, 0, 1, 1], [], []>} : vector<128x32xf32>, vector<32x32xf32>, vector<128x32xf32> -> vector<128x32xf32>
    %c0_3 = arith.constant 0 : index
    %c0_4 = arith.constant 0 : index
    %3 = vector.load %arg3[%c0_3, %c0_4] : memref<128x1xf32, #tpu.memory_space<vmem>>, vector<128x1xf32>
    %4 = vector.broadcast %3 : vector<128x1xf32> to vector<128x32xf32>
    %5 = arith.mulf %2, %4 : vector<128x32xf32>
    %c0_5 = arith.constant 0 : index
    %c0_6 = arith.constant 0 : index
    %6 = vector.load %arg5[%c0_5, %c0_6] : memref<128x32xf32, #tpu.memory_space<vmem>>, vector<128x32xf32>
    tpu.vector_store %arg5[%c0_5, %c0_6], %5 {strides = array<i32>} : memref<128x32xf32, #tpu.memory_space<vmem>>, vector<128x32xf32>,
    %c0_7 = arith.constant 0 : index
    %c0_8 = arith.constant 0 : index
    %7 = vector.load %arg4[%c0_7, %c0_8] : memref<32x8xf32, #tpu.memory_space<vmem>>, vector<32x8xf32>
    %cst_9 = arith.constant dense<0.000000e+00> : vector<128x8xf32>
    %8 = tpu.matmul %2, %7, %cst_9 {dimension_numbers = #tpu.dot_dimension_numbers<[1], [0], [0], [1], [0, 0, 1, 1], [], []>} : vector<128x32xf32>, vector<32x8xf32>, vector<128x8xf32> -> vector<128x8xf32>
    %9 = tpu.iota {dimensions = array<i32: 1>} : vector<128x8xi32>
    %c4_i32 = arith.constant 4 : i32
    %10 = vector.broadcast %c4_i32 : i32 to vector<128x8xi32>
    %11 = arith.cmpi slt, %9, %10 : vector<128x8xi32>
    %12 = vector.broadcast %3 : vector<128x1xf32> to vector<128x8xf32>
    %13 = arith.mulf %8, %12 : vector<128x8xf32>
    %14 = arith.select %11, %13, %8 : vector<128x8xi1>, vector<128x8xf32>
    %c0_10 = arith.constant 0 : index
    %c0_11 = arith.constant 0 : index
    %15 = vector.load %arg6[%c0_10, %c0_11] : memref<128x8xf32, #tpu.memory_space<vmem>>, vector<128x8xf32>
    tpu.vector_store %arg6[%c0_10, %c0_11], %14 {strides = array<i32>} : memref<128x8xf32, #tpu.memory_space<vmem>>, vector<128x8xf32>,
    return
  }
  func.func @transform_0(%arg0: i32) -> (i32, i32) {
    %c0_i32 = arith.constant 0 : i32
    %c0_i32_0 = arith.constant 0 : i32
    return %arg0, %c0_i32 : i32, i32
  }
  func.func @transform_1(%arg0: i32) -> (i32, i32) {
    %c0_i32 = arith.constant 0 : i32
    %c0_i32_0 = arith.constant 0 : i32
    %c0_i32_1 = arith.constant 0 : i32
    return %c0_i32, %c0_i32_0 : i32, i32
  }
  func.func @transform_2(%arg0: i32) -> (i32, i32) {
    %c0_i32 = arith.constant 0 : i32
    %c0_i32_0 = arith.constant 0 : i32
    return %arg0, %c0_i32 : i32, i32
  }
  func.func @transform_3(%arg0: i32) -> (i32, i32) {
    %c0_i32 = arith.constant 0 : i32
    %c0_i32_0 = arith.constant 0 : i32
    %c0_i32_1 = arith.constant 0 : i32
    return %c0_i32, %c0_i32_0 : i32, i32
  }
  func.func @transform_4(%arg0: i32) -> (i32, i32) {
    %c0_i32 = arith.constant 0 : i32
    %c0_i32_0 = arith.constant 0 : i32
    return %arg0, %c0_i32 : i32, i32
  }
  func.func @transform_5(%arg0: i32) -> (i32, i32) {
    %c0_i32 = arith.constant 0 : i32
    %c0_i32_0 = arith.constant 0 : i32
    return %arg0, %c0_i32 : i32, i32
  }
}

</mosaic_0001>

<llo_original>
// kernel: tpu_custom_call.1
$region0: #{tpu_custom_call.1}
  #allocation0 [shape = 'u32[]', space=smem, size = 0x4, offset = 0x4, fixed_abs, tag = 'smem constant byte address 0x4 - core index']
  #allocation1 [shape = 'u32[72,128]{1,0:T(1,128)}', space=vmem, size = 0x9000, scoped, tag = 'internal scratch']
  %s0 = inlined_call_operand.vmem [shape: f32[256,32], index: 0, kind: input, shape index: {}]
  %s1 = inlined_call_operand.vmem [shape: f32[32,32], index: 1, kind: input, shape index: {}]
  %s2 = inlined_call_operand.vmem [shape: f32[256,1], index: 2, kind: input, shape index: {}]
  %s3 = inlined_call_operand.vmem [shape: f32[32,8], index: 3, kind: input, shape index: {}]
  %s4 = inlined_call_operand.vmem [shape: f32[256,32], index: 4, kind: output, shape index: {0}]
  %s5 = inlined_call_operand.vmem [shape: f32[256,8], index: 5, kind: output, shape index: {1}]
  %6 = xla_tuple %s4, %s5
  %s7 = sld [smem:[#allocation0]]
  $region57: #{tpu_custom_call.1} parent=0
    _
  %s9 = ssub.s32 1, %s7
  %s10 = scalar_select 0, %s9, %s7
  loop: start=0, step=1, limit=4
  $region2: #{tpu_custom_call.1} parent=0 // loop_pre_header
    _
  $region3: #{tpu_custom_call.1} parent=0 // loop_header
    %s12 = sphi 0, %s16
    %p13 = scmp.ge.s32.totalorder %s12, 4
    %s22 = sphi 0, %s24
    %s25 = sphi 0, %s22
    %s26 = sphi 0, %s25
    %s42 = sphi 0, %s26
    %s46 = sphi 0, %s46
    %s48 = sphi 0, %s46
    %s49 = sphi 0, %s48
    %s63 = sphi 0, %s49
    %s69 = sphi 0, %s71
    %s72 = sphi 0, %s69
    %s73 = sphi 0, %s72
    %s89 = sphi 0, %s73
    %s93 = sphi 0, %s93
    %s95 = sphi 0, %s93
    %s96 = sphi 0, %s95
    %s110 = sphi 0, %s96
    %s116 = sphi 0, %s118
    %s119 = sphi 0, %s116
    %s120 = sphi 0, %s119
    %s136 = sphi 0, %s120
    %s142 = sphi 0, %s144
    %s145 = sphi 0, %s142
    %s146 = sphi 0, %s145
    %s162 = sphi 0, %s146
  $region4: #{tpu_custom_call.1} parent=0 // loop_header_branch
    %15 = sbr.rel (%p13) target = $region8
  $region5: #{tpu_custom_call.1} parent=0 // loop_body
    %s17 = ssub.s32 %s12, 1
    %s18 = ssub.s32 %s12, 2
    %s19 = sadd.s32 %s12, 1
    %s20 = ssub.s32 %s12, %s19
    %p21 = scmp.eq.s32.totalorder %s20, 0
    %s23 = sadd.s32 %s22, 1
    %s24 = scalar_select %p21, %s22, %s23
    %p27 = pneg %p21
    %p28 = scmp.eq.s32.totalorder %s12, 1
    %p29 = por %p27, %p28
    %p30 = scmp.ne.s32.totalorder %s22, %s25
    %p31 = scmp.eq.s32.totalorder %s12, 0
    %p32 = por %p30, %p31
    %p33 = scmp.ne.s32.totalorder %s22, %s25
    %p34 = scmp.eq.s32.totalorder %s17, 1
    %p35 = por %p33, %p34
    %p36 = scmp.ne.s32.totalorder %s25, %s26
    %p37 = scmp.eq.s32.totalorder %s17, 0
    %p38 = por %p36, %p37
    %p39 = scmp.ne.s32.totalorder %s25, %s26
    %p40 = scmp.eq.s32.totalorder %s18, 1
    %p41 = por %p39, %p40
    %p43 = scmp.ne.s32.totalorder %s26, %s42
    %p44 = scmp.eq.s32.totalorder %s18, 0
    %p45 = por %p43, %p44
    %s47 = sadd.s32 %s46, 1
    %p50 = scmp.eq.s32.totalorder %s12, 1
    %p51 = scmp.ne.s32.totalorder %s46, %s48
    %p52 = scmp.eq.s32.totalorder %s12, 0
    %p53 = por %p51, %p52
    %p54 = scmp.ne.s32.totalorder %s46, %s48
    %p55 = scmp.eq.s32.totalorder %s17, 1
    %p56 = por %p54, %p55
    %p57 = scmp.ne.s32.totalorder %s48, %s49
    %p58 = scmp.eq.s32.totalorder %s17, 0
    %p59 = por %p57, %p58
    %p60 = scmp.ne.s32.totalorder %s48, %s49
    %p61 = scmp.eq.s32.totalorder %s18, 1
    %p62 = por %p60, %p61
    %p64 = scmp.ne.s32.totalorder %s49, %s63
    %p65 = scmp.eq.s32.totalorder %s18, 0
    %p66 = por %p64, %p65
    %s67 = ssub.s32 %s12, %s19
    %p68 = scmp.eq.s32.totalorder %s67, 0
    %s70 = sadd.s32 %s69, 1
    %s71 = scalar_select %p68, %s69, %s70
    %p74 = pneg %p68
    %p75 = scmp.eq.s32.totalorder %s12, 1
    %p76 = por %p74, %p75
    %p77 = scmp.ne.s32.totalorder %s69, %s72
    %p78 = scmp.eq.s32.totalorder %s12, 0
    %p79 = por %p77, %p78
    %p80 = scmp.ne.s32.totalorder %s69, %s72
    %p81 = scmp.eq.s32.totalorder %s17, 1
    %p82 = por %p80, %p81
    %p83 = scmp.ne.s32.totalorder %s72, %s73
    %p84 = scmp.eq.s32.totalorder %s17, 0
    %p85 = por %p83, %p84
    %p86 = scmp.ne.s32.totalorder %s72, %s73
    %p87 = scmp.eq.s32.totalorder %s18, 1
    %p88 = por %p86, %p87
    %p90 = scmp.ne.s32.totalorder %s73, %s89
    %p91 = scmp.eq.s32.totalorder %s18, 0
    %p92 = por %p90, %p91
    %s94 = sadd.s32 %s93, 1
    %p97 = scmp.eq.s32.totalorder %s12, 1
    %p98 = scmp.ne.s32.totalorder %s93, %s95
    %p99 = scmp.eq.s32.totalorder %s12, 0
    %p100 = por %p98, %p99
    %p101 = scmp.ne.s32.totalorder %s93, %s95
    %p102 = scmp.eq.s32.totalorder %s17, 1
    %p103 = por %p101, %p102
    %p104 = scmp.ne.s32.totalorder %s95, %s96
    %p105 = scmp.eq.s32.totalorder %s17, 0
    %p106 = por %p104, %p105
    %p107 = scmp.ne.s32.totalorder %s95, %s96
    %p108 = scmp.eq.s32.totalorder %s18, 1
    %p109 = por %p107, %p108
    %p111 = scmp.ne.s32.totalorder %s96, %s110
    %p112 = scmp.eq.s32.totalorder %s18, 0
    %p113 = por %p111, %p112
    %s114 = ssub.s32 %s12, %s19
    %p115 = scmp.eq.s32.totalorder %s114, 0
    %s117 = sadd.s32 %s116, 1
    %s118 = scalar_select %p115, %s116, %s117
    %p121 = pneg %p115
    %p122 = scmp.eq.s32.totalorder %s12, 1
    %p123 = por %p121, %p122
    %p124 = scmp.ne.s32.totalorder %s116, %s119
    %p125 = scmp.eq.s32.totalorder %s12, 0
    %p126 = por %p124, %p125
    %p127 = scmp.ne.s32.totalorder %s116, %s119
    %p128 = scmp.eq.s32.totalorder %s17, 1
    %p129 = por %p127, %p128
    %p130 = scmp.ne.s32.totalorder %s119, %s120
    %p131 = scmp.eq.s32.totalorder %s17, 0
    %p132 = por %p130, %p131
    %p133 = scmp.ne.s32.totalorder %s119, %s120
    %p134 = scmp.eq.s32.totalorder %s18, 1
    %p135 = por %p133, %p134
    %p137 = scmp.ne.s32.totalorder %s120, %s136
    %p138 = scmp.eq.s32.totalorder %s18, 0
    %p139 = por %p137, %p138
    %s140 = ssub.s32 %s12, %s19
    %p141 = scmp.eq.s32.totalorder %s140, 0
    %s143 = sadd.s32 %s142, 1
    %s144 = scalar_select %p141, %s142, %s143
    %p147 = pneg %p141
    %p148 = scmp.eq.s32.totalorder %s12, 1
    %p149 = por %p147, %p148
    %p150 = scmp.ne.s32.totalorder %s142, %s145
    %p151 = scmp.eq.s32.totalorder %s12, 0
    %p152 = por %p150, %p151
    %p153 = scmp.ne.s32.totalorder %s142, %s145
    %p154 = scmp.eq.s32.totalorder %s17, 1
    %p155 = por %p153, %p154
    %p156 = scmp.ne.s32.totalorder %s145, %s146
    %p157 = scmp.eq.s32.totalorder %s17, 0
    %p158 = por %p156, %p157
    %p159 = scmp.ne.s32.totalorder %s145, %s146
    %p160 = scmp.eq.s32.totalorder %s18, 1
    %p161 = por %p159, %p160
    %p163 = scmp.ne.s32.totalorder %s146, %s162
    %p164 = scmp.eq.s32.totalorder %s18, 0
    %p165 = por %p163, %p164
    %p166 = scmp.le.s32.totalorder 1, %s12
    %p167 = scmp.lt.s32.totalorder %s12, 3
    %p168 = pnand %p166, %p167
    %p169 = pneg %p168
    // Predicated region
    $region9: #{tpu_custom_call.1} parent=5 // pred_check
      _
    $region10: #{tpu_custom_call.1} parent=5 // pred_check_branch
      %171 = sbr.rel (%p168) target = $region12
    $region11: #{tpu_custom_call.1} parent=5 // pred_region
      %s172 = ssub.s32 %s12, 1
      // Predicated region
      $region13: #{tpu_custom_call.1} parent=11 // pred_check
        %p173 = pneg %p59
      $region14: #{tpu_custom_call.1} parent=11 // pred_check_branch
        %175 = sbr.rel (%p173) target = $region16
      $region15: #{tpu_custom_call.1} parent=11 // pred_region
        _
      $region16: #{tpu_custom_call.1} parent=11 // pred_fallthru
        _
      // Predicated region
      $region17: #{tpu_custom_call.1} parent=11 // pred_check
        %p176 = pneg %p106
      $region18: #{tpu_custom_call.1} parent=11 // pred_check_branch
        %178 = sbr.rel (%p176) target = $region20
      $region19: #{tpu_custom_call.1} parent=11 // pred_region
        _
      $region20: #{tpu_custom_call.1} parent=11 // pred_fallthru
        _
    $region12: #{tpu_custom_call.1} parent=5 // pred_fallthru
      _
    %p179 = scmp.lt.s32.totalorder %s12, 2
    // Predicated region
    $region21: #{tpu_custom_call.1} parent=5 // pred_check
      %p180 = pneg %p179
    $region22: #{tpu_custom_call.1} parent=5 // pred_check_branch
      %182 = sbr.rel (%p180) target = $region24
    $region23: #{tpu_custom_call.1} parent=5 // pred_region
      // Predicated region
      $region25: #{tpu_custom_call.1} parent=23 // pred_check
        %p183 = pneg %p32
      $region26: #{tpu_custom_call.1} parent=23 // pred_check_branch
        %185 = sbr.rel (%p183) target = $region28
      $region27: #{tpu_custom_call.1} parent=23 // pred_region
        %s186 = smul.u32 16, %s12
        %p187 = scmp.lt.s32.totalorder %s186, 31
        %s188 = scalar_select %p187, %s186, 31
        %s189 = smul.addr %s188, 8
        %s190 = scalar_lea.vmem %s0, %s189
        %s191 = smul.u32 16, %s12
      $region28: #{tpu_custom_call.1} parent=23 // pred_fallthru
        _
      // Predicated region
      $region29: #{tpu_custom_call.1} parent=23 // pred_check
        %p192 = pneg %p79
      $region30: #{tpu_custom_call.1} parent=23 // pred_check_branch
        %194 = sbr.rel (%p192) target = $region32
      $region31: #{tpu_custom_call.1} parent=23 // pred_region
        %s195 = smul.u32 16, %s12
        %p196 = scmp.lt.s32.totalorder %s195, 31
        %s197 = scalar_select %p196, %s195, 31
        %s198 = smul.addr %s197, 8
        %s199 = scalar_lea.vmem %s2, %s198
        %s200 = smul.u32 16, %s12
      $region32: #{tpu_custom_call.1} parent=23 // pred_fallthru
        _
    $region24: #{tpu_custom_call.1} parent=5 // pred_fallthru
      _
    %p201 = scmp.le.s32.totalorder 1, %s12
    %p202 = scmp.lt.s32.totalorder %s12, 3
    %p203 = pnand %p201, %p202
    %p204 = pneg %p203
    // Predicated region
    $region33: #{tpu_custom_call.1} parent=5 // pred_check
      _
    $region34: #{tpu_custom_call.1} parent=5 // pred_check_branch
      %206 = sbr.rel (%p203) target = $region36
    $region35: #{tpu_custom_call.1} parent=5 // pred_region
      %s207 = ssub.s32 %s12, 1
      %s208 = smul.u32 16, %s17
      %p209 = scmp.lt.s32.totalorder %s208, 31
      %s210 = scalar_select %p209, %s208, 31
      %s211 = smul.addr %s210, 8
      %s212 = scalar_lea.vmem %s0, %s211
      %p213 = pneg %p38
      %p214 = pneg %p35
      %p215 = pneg %p59
      %p216 = pneg %p56
      %s217 = smul.u32 16, %s17
      %p218 = scmp.lt.s32.totalorder %s217, 31
      %s219 = scalar_select %p218, %s217, 31
      %s220 = smul.addr %s219, 8
      %s221 = scalar_lea.vmem %s2, %s220
      %p222 = pneg %p85
      %p223 = pneg %p82
      %p224 = pneg %p106
      %p225 = pneg %p103
      %p226 = pneg %p132
      %p227 = pneg %p129
      %s228 = smul.u32 16, %s17
      %p229 = scmp.lt.s32.totalorder %s228, 31
      %s230 = scalar_select %p229, %s228, 31
      %s231 = smul.addr %s230, 8
      %s232 = scalar_lea.vmem %s4, %s231
      %p233 = pneg %p158
      %p234 = pneg %p155
      %s235 = smul.u32 16, %s17
      %p236 = scmp.lt.s32.totalorder %s235, 31
      %s237 = scalar_select %p236, %s235, 31
      %s238 = smul.addr %s237, 8
      %s239 = scalar_lea.vmem %s5, %s238
      %s240 = smul.u32 16, %s17
      %p241 = scmp.lt.s32.totalorder %s240, 31
      %s242 = scalar_select %p241, %s240, 31
      %s243 = smul.addr %s242, 8
      %s244 = scalar_lea.vmem %s0, %s243
      %s245 = smul.u32 16, %s17
      %s246 = smul.u32 16, %s17
      %p247 = scmp.lt.s32.totalorder %s246, 31
      %s248 = scalar_select %p247, %s246, 31
      %s249 = smul.addr %s248, 8
      %s250 = scalar_lea.vmem %s2, %s249
      %s251 = smul.u32 16, %s17
      %s252 = smul.u32 16, %s17
      %p253 = scmp.lt.s32.totalorder %s252, 31
      %s254 = scalar_select %p253, %s252, 31
      %s255 = smul.addr %s254, 8
      %s256 = scalar_lea.vmem %s4, %s255
      %s257 = smul.u32 16, %s17
      %s258 = smul.u32 16, %s17
      %p259 = scmp.lt.s32.totalorder %s258, 31
      %s260 = scalar_select %p259, %s258, 31
      %s261 = smul.addr %s260, 8
      %s262 = scalar_lea.vmem %s5, %s261
      %s263 = smul.u32 16, %s17
      %v264 = vld [vmem:[%s244] sm:$0xff]
      %v265 = vld [vmem:[%s244 + $0x8] sm:$0xff]
      %v266 = vld [vmem:[%s244 + $0x10] sm:$0xff]
      %v267 = vld [vmem:[%s244 + $0x18] sm:$0xff]
      %v268 = vld [vmem:[%s244 + $0x20] sm:$0xff]
      %v269 = vld [vmem:[%s244 + $0x28] sm:$0xff]
      %v270 = vld [vmem:[%s244 + $0x30] sm:$0xff]
      %v271 = vld [vmem:[%s244 + $0x38] sm:$0xff]
      %v272 = vld [vmem:[%s244 + $0x40] sm:$0xff]
      %v273 = vld [vmem:[%s244 + $0x48] sm:$0xff]
      %v274 = vld [vmem:[%s244 + $0x50] sm:$0xff]
      %v275 = vld [vmem:[%s244 + $0x58] sm:$0xff]
      %v276 = vld [vmem:[%s244 + $0x60] sm:$0xff]
      %v277 = vld [vmem:[%s244 + $0x68] sm:$0xff]
      %v278 = vld [vmem:[%s244 + $0x70] sm:$0xff]
      %v279 = vld [vmem:[%s244 + $0x78] sm:$0xff]
      %v280 = vld [vmem:[%s1] sm:$0xff]
      %v281 = vld [vmem:[%s1 + $0x8] sm:$0xff]
      %v282 = vld [vmem:[%s1 + $0x10] sm:$0xff]
      %v283 = vld [vmem:[%s1 + $0x18] sm:$0xff]
      %vm284 = vcmask 261120
      %v286 = vsel %vm284, %v264, 0
      %v289 = vsel %vm284, %v265, 0
      %v292 = vsel %vm284, %v266, 0
      %v295 = vsel %vm284, %v267, 0
      %v298 = vsel %vm284, %v268, 0
      %v301 = vsel %vm284, %v269, 0
      %v304 = vsel %vm284, %v270, 0
      %v307 = vsel %vm284, %v271, 0
      %v310 = vsel %vm284, %v272, 0
      %v313 = vsel %vm284, %v273, 0
      %v316 = vsel %vm284, %v274, 0
      %v319 = vsel %vm284, %v275, 0
      %v322 = vsel %vm284, %v276, 0
      %v325 = vsel %vm284, %v277, 0
      %v328 = vsel %vm284, %v278, 0
      %v331 = vsel %vm284, %v279, 0
      %333 = vmatpush.msra.mxu0 0.0
      %334 = vmatpush.msra.mxu0 0.0
      %335 = vmatpush.msra.mxu0 0.0
      %336 = vmatpush.msra.mxu0 0.0
      %337 = vmatpush.msra.mxu0 0.0
      %338 = vmatpush.msra.mxu0 0.0
      %339 = vmatpush.msra.mxu0 0.0
      %340 = vmatpush.msra.mxu0 0.0
      %341 = vmatpush.msra.mxu0 0.0
      %342 = vmatpush.msra.mxu0 0.0
      %343 = vmatpush.msra.mxu0 0.0
      %344 = vmatpush.msra.mxu0 0.0
      %345 = vmatpush.msra.mxu0 %v283
      %346 = vmatpush.msra.mxu0 %v282
      %347 = vmatpush.msra.mxu0 %v281
      %348 = vmatpush.msra.mxu0 %v280
      %349 = vmatmul.f32.gmra.mxu0 %v286
      %v350 = vpop.f32.mrf.mxu0
      %v351 = vadd.f32 0.0, %v350
      %352 = vmatmul.f32.gmra.mxu0 %v289
      %v353 = vpop.f32.mrf.mxu0
      %v354 = vadd.f32 0.0, %v353
      %355 = vmatmul.f32.gmra.mxu0 %v292
      %v356 = vpop.f32.mrf.mxu0
      %v357 = vadd.f32 0.0, %v356
      %358 = vmatmul.f32.gmra.mxu0 %v295
      %v359 = vpop.f32.mrf.mxu0
      %v360 = vadd.f32 0.0, %v359
      %361 = vmatmul.f32.gmra.mxu0 %v298
      %v362 = vpop.f32.mrf.mxu0
      %v363 = vadd.f32 0.0, %v362
      %364 = vmatmul.f32.gmra.mxu0 %v301
      %v365 = vpop.f32.mrf.mxu0
      %v366 = vadd.f32 0.0, %v365
      %367 = vmatmul.f32.gmra.mxu0 %v304
      %v368 = vpop.f32.mrf.mxu0
      %v369 = vadd.f32 0.0, %v368
      %370 = vmatmul.f32.gmra.mxu0 %v307
      %v371 = vpop.f32.mrf.mxu0
      %v372 = vadd.f32 0.0, %v371
      %373 = vmatmul.f32.gmra.mxu0 %v310
      %v374 = vpop.f32.mrf.mxu0
      %v375 = vadd.f32 0.0, %v374
      %376 = vmatmul.f32.gmra.mxu0 %v313
      %v377 = vpop.f32.mrf.mxu0
      %v378 = vadd.f32 0.0, %v377
      %379 = vmatmul.f32.gmra.mxu0 %v316
      %v380 = vpop.f32.mrf.mxu0
      %v381 = vadd.f32 0.0, %v380
      %382 = vmatmul.f32.gmra.mxu0 %v319
      %v383 = vpop.f32.mrf.mxu0
      %v384 = vadd.f32 0.0, %v383
      %385 = vmatmul.f32.gmra.mxu0 %v322
      %v386 = vpop.f32.mrf.mxu0
      %v387 = vadd.f32 0.0, %v386
      %388 = vmatmul.f32.gmra.mxu0 %v325
      %v389 = vpop.f32.mrf.mxu0
      %v390 = vadd.f32 0.0, %v389
      %391 = vmatmul.f32.gmra.mxu0 %v328
      %v392 = vpop.f32.mrf.mxu0
      %v393 = vadd.f32 0.0, %v392
      %394 = vmatmul.f32.gmra.mxu0 %v331
      %v395 = vpop.f32.mrf.mxu0
      %v396 = vadd.f32 0.0, %v395
      %397 = vdwg.mxu0
      %v398 = vld [vmem:[%s250] sm:$0xff]
      %v399 = vld [vmem:[%s250 + $0x8] sm:$0xff]
      %v400 = vld [vmem:[%s250 + $0x10] sm:$0xff]
      %v401 = vld [vmem:[%s250 + $0x18] sm:$0xff]
      %v402 = vld [vmem:[%s250 + $0x20] sm:$0xff]
      %v403 = vld [vmem:[%s250 + $0x28] sm:$0xff]
      %v404 = vld [vmem:[%s250 + $0x30] sm:$0xff]
      %v405 = vld [vmem:[%s250 + $0x38] sm:$0xff]
      %v406 = vld [vmem:[%s250 + $0x40] sm:$0xff]
      %v407 = vld [vmem:[%s250 + $0x48] sm:$0xff]
      %v408 = vld [vmem:[%s250 + $0x50] sm:$0xff]
      %v409 = vld [vmem:[%s250 + $0x58] sm:$0xff]
      %v410 = vld [vmem:[%s250 + $0x60] sm:$0xff]
      %v411 = vld [vmem:[%s250 + $0x68] sm:$0xff]
      %v412 = vld [vmem:[%s250 + $0x70] sm:$0xff]
      %v413 = vld [vmem:[%s250 + $0x78] sm:$0xff]
      %415 = vset.pattern.permute.xlu0 0
      %416 = vperm.xlu0 %415, %v398
      %v417 = vpop.permute.xlu0 %416
      %420 = vset.pattern.permute.xlu0 0
      %421 = vperm.xlu0 %420, %v399
      %v422 = vpop.permute.xlu0 %421
      %425 = vset.pattern.permute.xlu0 0
      %426 = vperm.xlu0 %425, %v400
      %v427 = vpop.permute.xlu0 %426
      %430 = vset.pattern.permute.xlu0 0
      %431 = vperm.xlu0 %430, %v401
      %v432 = vpop.permute.xlu0 %431
      %435 = vset.pattern.permute.xlu0 0
      %436 = vperm.xlu0 %435, %v402
      %v437 = vpop.permute.xlu0 %436
      %440 = vset.pattern.permute.xlu0 0
      %441 = vperm.xlu0 %440, %v403
      %v442 = vpop.permute.xlu0 %441
      %445 = vset.pattern.permute.xlu0 0
      %446 = vperm.xlu0 %445, %v404
      %v447 = vpop.permute.xlu0 %446
      %450 = vset.pattern.permute.xlu0 0
      %451 = vperm.xlu0 %450, %v405
      %v452 = vpop.permute.xlu0 %451
      %455 = vset.pattern.permute.xlu0 0
      %456 = vperm.xlu0 %455, %v406
      %v457 = vpop.permute.xlu0 %456
      %460 = vset.pattern.permute.xlu0 0
      %461 = vperm.xlu0 %460, %v407
      %v462 = vpop.permute.xlu0 %461
      %465 = vset.pattern.permute.xlu0 0
      %466 = vperm.xlu0 %465, %v408
      %v467 = vpop.permute.xlu0 %466
      %470 = vset.pattern.permute.xlu0 0
      %471 = vperm.xlu0 %470, %v409
      %v472 = vpop.permute.xlu0 %471
      %475 = vset.pattern.permute.xlu0 0
      %476 = vperm.xlu0 %475, %v410
      %v477 = vpop.permute.xlu0 %476
      %480 = vset.pattern.permute.xlu0 0
      %481 = vperm.xlu0 %480, %v411
      %v482 = vpop.permute.xlu0 %481
      %485 = vset.pattern.permute.xlu0 0
      %486 = vperm.xlu0 %485, %v412
      %v487 = vpop.permute.xlu0 %486
      %490 = vset.pattern.permute.xlu0 0
      %491 = vperm.xlu0 %490, %v413
      %v492 = vpop.permute.xlu0 %491
      %v494 = vmul.f32 %v351, %v417
      %v495 = vmul.f32 %v354, %v422
      %v496 = vmul.f32 %v357, %v427
      %v497 = vmul.f32 %v360, %v432
      %v498 = vmul.f32 %v363, %v437
      %v499 = vmul.f32 %v366, %v442
      %v500 = vmul.f32 %v369, %v447
      %v501 = vmul.f32 %v372, %v452
      %v502 = vmul.f32 %v375, %v457
      %v503 = vmul.f32 %v378, %v462
      %v504 = vmul.f32 %v381, %v467
      %v505 = vmul.f32 %v384, %v472
      %v506 = vmul.f32 %v387, %v477
      %v507 = vmul.f32 %v390, %v482
      %v508 = vmul.f32 %v393, %v487
      %v509 = vmul.f32 %v396, %v492
      %510 = vst.msk [vmem:[%s256] sm:$0xff] %vm284, %v494
      %511 = vst.msk [vmem:[%s256 + $0x8] sm:$0xff] %vm284, %v495
      %512 = vst.msk [vmem:[%s256 + $0x10] sm:$0xff] %vm284, %v496
      %513 = vst.msk [vmem:[%s256 + $0x18] sm:$0xff] %vm284, %v497
      %514 = vst.msk [vmem:[%s256 + $0x20] sm:$0xff] %vm284, %v498
      %515 = vst.msk [vmem:[%s256 + $0x28] sm:$0xff] %vm284, %v499
      %516 = vst.msk [vmem:[%s256 + $0x30] sm:$0xff] %vm284, %v500
      %517 = vst.msk [vmem:[%s256 + $0x38] sm:$0xff] %vm284, %v501
      %518 = vst.msk [vmem:[%s256 + $0x40] sm:$0xff] %vm284, %v502
      %519 = vst.msk [vmem:[%s256 + $0x48] sm:$0xff] %vm284, %v503
      %520 = vst.msk [vmem:[%s256 + $0x50] sm:$0xff] %vm284, %v504
      %521 = vst.msk [vmem:[%s256 + $0x58] sm:$0xff] %vm284, %v505
      %522 = vst.msk [vmem:[%s256 + $0x60] sm:$0xff] %vm284, %v506
      %523 = vst.msk [vmem:[%s256 + $0x68] sm:$0xff] %vm284, %v507
      %524 = vst.msk [vmem:[%s256 + $0x70] sm:$0xff] %vm284, %v508
      %525 = vst.msk [vmem:[%s256 + $0x78] sm:$0xff] %vm284, %v509
      %v526 = vld [vmem:[%s3] sm:$0xff]
      %v527 = vld [vmem:[%s3 + $0x8] sm:$0xff]
      %v528 = vld [vmem:[%s3 + $0x10] sm:$0xff]
      %v529 = vld [vmem:[%s3 + $0x18] sm:$0xff]
      %v531 = vsel %vm284, %v351, 0
      %v534 = vsel %vm284, %v354, 0
      %v537 = vsel %vm284, %v357, 0
      %v540 = vsel %vm284, %v360, 0
      %v543 = vsel %vm284, %v363, 0
      %v546 = vsel %vm284, %v366, 0
      %v549 = vsel %vm284, %v369, 0
      %v552 = vsel %vm284, %v372, 0
      %v555 = vsel %vm284, %v375, 0
      %v558 = vsel %vm284, %v378, 0
      %v561 = vsel %vm284, %v381, 0
      %v564 = vsel %vm284, %v384, 0
      %v567 = vsel %vm284, %v387, 0
      %v570 = vsel %vm284, %v390, 0
      %v573 = vsel %vm284, %v393, 0
      %v576 = vsel %vm284, %v396, 0
      %578 = vmatpush.msra.mxu0 0.0
      %579 = vmatpush.msra.mxu0 0.0
      %580 = vmatpush.msra.mxu0 0.0
      %581 = vmatpush.msra.mxu0 0.0
      %582 = vmatpush.msra.mxu0 0.0
      %583 = vmatpush.msra.mxu0 0.0
      %584 = vmatpush.msra.mxu0 0.0
      %585 = vmatpush.msra.mxu0 0.0
      %586 = vmatpush.msra.mxu0 0.0
      %587 = vmatpush.msra.mxu0 0.0
      %588 = vmatpush.msra.mxu0 0.0
      %589 = vmatpush.msra.mxu0 0.0
      %590 = vmatpush.msra.mxu0 %v529
      %591 = vmatpush.msra.mxu0 %v528
      %592 = vmatpush.msra.mxu0 %v527
      %593 = vmatpush.msra.mxu0 %v526
      %594 = vmatmul.f32.gmra.mxu0 %v531
      %v595 = vpop.f32.mrf.mxu0
      %v596 = vadd.f32 0.0, %v595
      %597 = vmatmul.f32.gmra.mxu0 %v534
      %v598 = vpop.f32.mrf.mxu0
      %v599 = vadd.f32 0.0, %v598
      %600 = vmatmul.f32.gmra.mxu0 %v537
      %v601 = vpop.f32.mrf.mxu0
      %v602 = vadd.f32 0.0, %v601
      %603 = vmatmul.f32.gmra.mxu0 %v540
      %v604 = vpop.f32.mrf.mxu0
      %v605 = vadd.f32 0.0, %v604
      %606 = vmatmul.f32.gmra.mxu0 %v543
      %v607 = vpop.f32.mrf.mxu0
      %v608 = vadd.f32 0.0, %v607
      %609 = vmatmul.f32.gmra.mxu0 %v546
      %v610 = vpop.f32.mrf.mxu0
      %v611 = vadd.f32 0.0, %v610
      %612 = vmatmul.f32.gmra.mxu0 %v549
      %v613 = vpop.f32.mrf.mxu0
      %v614 = vadd.f32 0.0, %v613
      %615 = vmatmul.f32.gmra.mxu0 %v552
      %v616 = vpop.f32.mrf.mxu0
      %v617 = vadd.f32 0.0, %v616
      %618 = vmatmul.f32.gmra.mxu0 %v555
      %v619 = vpop.f32.mrf.mxu0
      %v620 = vadd.f32 0.0, %v619
      %621 = vmatmul.f32.gmra.mxu0 %v558
      %v622 = vpop.f32.mrf.mxu0
      %v623 = vadd.f32 0.0, %v622
      %624 = vmatmul.f32.gmra.mxu0 %v561
      %v625 = vpop.f32.mrf.mxu0
      %v626 = vadd.f32 0.0, %v625
      %627 = vmatmul.f32.gmra.mxu0 %v564
      %v628 = vpop.f32.mrf.mxu0
      %v629 = vadd.f32 0.0, %v628
      %630 = vmatmul.f32.gmra.mxu0 %v567
      %v631 = vpop.f32.mrf.mxu0
      %v632 = vadd.f32 0.0, %v631
      %633 = vmatmul.f32.gmra.mxu0 %v570
      %v634 = vpop.f32.mrf.mxu0
      %v635 = vadd.f32 0.0, %v634
      %636 = vmatmul.f32.gmra.mxu0 %v573
      %v637 = vpop.f32.mrf.mxu0
      %v638 = vadd.f32 0.0, %v637
      %639 = vmatmul.f32.gmra.mxu0 %v576
      %v640 = vpop.f32.mrf.mxu0
      %v641 = vadd.f32 0.0, %v640
      %642 = vdwg.mxu0
      %v643 = vlaneseq
      %v644 = vand.u32 %v643, 127
      %vm645 = vcmp.lt.s32.totalorder %v644, 4
      %v646 = vmul.f32 %v596, %v417
      %v647 = vmul.f32 %v599, %v422
      %v648 = vmul.f32 %v602, %v427
      %v649 = vmul.f32 %v605, %v432
      %v650 = vmul.f32 %v608, %v437
      %v651 = vmul.f32 %v611, %v442
      %v652 = vmul.f32 %v614, %v447
      %v653 = vmul.f32 %v617, %v452
      %v654 = vmul.f32 %v620, %v457
      %v655 = vmul.f32 %v623, %v462
      %v656 = vmul.f32 %v626, %v467
      %v657 = vmul.f32 %v629, %v472
      %v658 = vmul.f32 %v632, %v477
      %v659 = vmul.f32 %v635, %v482
      %v660 = vmul.f32 %v638, %v487
      %v661 = vmul.f32 %v641, %v492
      %v662 = vsel %vm645, %v646, %v596
      %v663 = vsel %vm645, %v647, %v599
      %v664 = vsel %vm645, %v648, %v602
      %v665 = vsel %vm645, %v649, %v605
      %v666 = vsel %vm645, %v650, %v608
      %v667 = vsel %vm645, %v651, %v611
      %v668 = vsel %vm645, %v652, %v614
      %v669 = vsel %vm645, %v653, %v617
      %v670 = vsel %vm645, %v654, %v620
      %v671 = vsel %vm645, %v655, %v623
      %v672 = vsel %vm645, %v656, %v626
      %v673 = vsel %vm645, %v657, %v629
      %v674 = vsel %vm645, %v658, %v632
      %v675 = vsel %vm645, %v659, %v635
      %v676 = vsel %vm645, %v660, %v638
      %v677 = vsel %vm645, %v661, %v641
      %vm678 = vcmask 64512
      %679 = vst.msk [vmem:[%s262] sm:$0xff] %vm678, %v662
      %680 = vst.msk [vmem:[%s262 + $0x8] sm:$0xff] %vm678, %v663
      %681 = vst.msk [vmem:[%s262 + $0x10] sm:$0xff] %vm678, %v664
      %682 = vst.msk [vmem:[%s262 + $0x18] sm:$0xff] %vm678, %v665
      %683 = vst.msk [vmem:[%s262 + $0x20] sm:$0xff] %vm678, %v666
      %684 = vst.msk [vmem:[%s262 + $0x28] sm:$0xff] %vm678, %v667
      %685 = vst.msk [vmem:[%s262 + $0x30] sm:$0xff] %vm678, %v668
      %686 = vst.msk [vmem:[%s262 + $0x38] sm:$0xff] %vm678, %v669
      %687 = vst.msk [vmem:[%s262 + $0x40] sm:$0xff] %vm678, %v670
      %688 = vst.msk [vmem:[%s262 + $0x48] sm:$0xff] %vm678, %v671
      %689 = vst.msk [vmem:[%s262 + $0x50] sm:$0xff] %vm678, %v672
      %690 = vst.msk [vmem:[%s262 + $0x58] sm:$0xff] %vm678, %v673
      %691 = vst.msk [vmem:[%s262 + $0x60] sm:$0xff] %vm678, %v674
      %692 = vst.msk [vmem:[%s262 + $0x68] sm:$0xff] %vm678, %v675
      %693 = vst.msk [vmem:[%s262 + $0x70] sm:$0xff] %vm678, %v676
      %694 = vst.msk [vmem:[%s262 + $0x78] sm:$0xff] %vm678, %v677
      %s695 = smul.u32 16, %s17
      %p696 = scmp.lt.s32.totalorder %s695, 31
      %s697 = scalar_select %p696, %s695, 31
      %s698 = smul.addr %s697, 8
      %s699 = scalar_lea.vmem %s4, %s698
      %s700 = smul.u32 16, %s17
      %p701 = scmp.lt.s32.totalorder %s700, 31
      %s702 = scalar_select %p701, %s700, 31
      %s703 = smul.addr %s702, 8
      %s704 = scalar_lea.vmem %s5, %s703
      // Predicated region
      $region37: #{tpu_custom_call.1} parent=35 // pred_check
        %p705 = pneg %p129
      $region38: #{tpu_custom_call.1} parent=35 // pred_check_branch
        %707 = sbr.rel (%p705) target = $region40
      $region39: #{tpu_custom_call.1} parent=35 // pred_region
        %s708 = smul.u32 16, %s17
      $region40: #{tpu_custom_call.1} parent=35 // pred_fallthru
        _
      // Predicated region
      $region41: #{tpu_custom_call.1} parent=35 // pred_check
        %p709 = pneg %p155
      $region42: #{tpu_custom_call.1} parent=35 // pred_check_branch
        %711 = sbr.rel (%p709) target = $region44
      $region43: #{tpu_custom_call.1} parent=35 // pred_region
        %s712 = smul.u32 16, %s17
      $region44: #{tpu_custom_call.1} parent=35 // pred_fallthru
        _
    $region36: #{tpu_custom_call.1} parent=5 // pred_fallthru
      _
    %p713 = scmp.le.s32.totalorder 2, %s12
    // Predicated region
    $region45: #{tpu_custom_call.1} parent=5 // pred_check
      %p714 = pneg %p713
    $region46: #{tpu_custom_call.1} parent=5 // pred_check_branch
      %716 = sbr.rel (%p714) target = $region48
    $region47: #{tpu_custom_call.1} parent=5 // pred_region
      %s717 = ssub.s32 %s12, 2
      // Predicated region
      $region49: #{tpu_custom_call.1} parent=47 // pred_check
        %p718 = pneg %p135
      $region50: #{tpu_custom_call.1} parent=47 // pred_check_branch
        %720 = sbr.rel (%p718) target = $region52
      $region51: #{tpu_custom_call.1} parent=47 // pred_region
        %s721 = smul.u32 16, %s18
        %p722 = scmp.lt.s32.totalorder %s721, 31
        %s723 = scalar_select %p722, %s721, 31
        %s724 = smul.addr %s723, 8
        %s725 = scalar_lea.vmem %s4, %s724
      $region52: #{tpu_custom_call.1} parent=47 // pred_fallthru
        _
      // Predicated region
      $region53: #{tpu_custom_call.1} parent=47 // pred_check
        %p726 = pneg %p161
      $region54: #{tpu_custom_call.1} parent=47 // pred_check_branch
        %728 = sbr.rel (%p726) target = $region56
      $region55: #{tpu_custom_call.1} parent=47 // pred_region
        %s729 = smul.u32 16, %s18
        %p730 = scmp.lt.s32.totalorder %s729, 31
        %s731 = scalar_select %p730, %s729, 31
        %s732 = smul.addr %s731, 8
        %s733 = scalar_lea.vmem %s5, %s732
      $region56: #{tpu_custom_call.1} parent=47 // pred_fallthru
        _
    $region48: #{tpu_custom_call.1} parent=5 // pred_fallthru
      _
  $region6: #{tpu_custom_call.1} parent=0 // loop_footer
    %s16 = sadd.s32 1, %s12
  $region7: #{tpu_custom_call.1} parent=0 // loop_footer_branch
    %11 = sbr.rel target = $region3
  $region8: #{tpu_custom_call.1} parent=0 // loop_exit
    _

</llo_original>
